<compile_context>
chip_gen: v7x
topology: tpu7x:2x2x1
jax: 0.10.0
libtpu: 0.0.40
codegen_flags: <defaults>
</compile_context>

<pallas_src>
import jax
import jax.numpy as jnp
import numpy as np
from jax.experimental import pallas as pl
from jax.experimental.pallas import tpu as pltpu


def _linear_kernel(e_ref, wt_ref, b_ref, o_ref):
    # e_ref:  [tile_n, D]       embedding rows (feature dim left unpadded)
    # wt_ref: [D, tile_j]       weight pre-transposed to (in, out); out cols 128-padded
    # b_ref:  [1, tile_j]       bias (f32), broadcasts over rows
    # o_ref:  [tile_n, tile_j]  lane-dense output tile
    acc = jnp.dot(e_ref[...], wt_ref[...], preferred_element_type=jnp.float32)
    o_ref[...] = (acc + b_ref[...]).astype(o_ref.dtype)


def deepwalk_forward(embedding, weight, bias, *, tile_n_cap=2048,
                     compute_dtype=None, force_pallas=False):
    """Compute nn.Linear(embedding): y = E @ W^T + b.

    embedding: [N, D] f32, weight: [D, D] f32 (out_features, in_features),
    bias: [D] f32. Returns [N, D] f32.
    """
    N, D = embedding.shape
    dtype = embedding.dtype

    # Small-problem fast path: one tiny fused XLA matmul beats the pallas_call
    # launch + layout plumbing by orders of magnitude.
    if not force_pallas and N * D < (1 << 17):
        return embedding @ weight.T + bias[None, :]

    if compute_dtype is None:
        # Set to jnp.bfloat16 on v6e/v7x to halve HBM traffic if tolerance allows.
        compute_dtype = dtype

    # Lane-dense output: pad only W^T's output columns / bias to a 128 multiple.
    D_pad = pl.cdiv(D, 128) * 128
    tile_j = 256 if D_pad % 256 == 0 else 128  # v6e/v7x MXU is 2x256 wide

    # Row tile: multiple of 8 sublanes, large enough to amortize per-step
    # overhead, but capped so the 'parallel' row axis has >=2 steps (v7x: 2 TCs).
    N8 = pl.cdiv(N, 8) * 8
    if N8 >= 16:
        tile_n = min(tile_n_cap, max(8, (N8 // 2) // 8 * 8))
    else:
        tile_n = N8
    N_pad = pl.cdiv(N, tile_n) * tile_n
    grid = (N_pad // tile_n, D_pad // tile_j)

    # Trace-time layout plumbing (zero padding only, mathematically inert).
    e = embedding.astype(compute_dtype)
    if N_pad != N:
        e = jnp.pad(e, ((0, N_pad - N), (0, 0)))
    w_t = jnp.pad(weight.T.astype(compute_dtype), ((0, 0), (0, D_pad - D)))
    b2d = jnp.pad(bias.astype(jnp.float32), (0, D_pad - D)).reshape(1, D_pad)

    in_bytes = jnp.dtype(compute_dtype).itemsize
    out_bytes = jnp.dtype(dtype).itemsize
    per_step_bytes = (tile_n * D * in_bytes          # E tile
                      + D * tile_j * in_bytes        # W^T tile
                      + tile_j * 4                   # bias tile
                      + tile_n * tile_j * out_bytes)  # output tile
    # Double-buffered by Pallas -> x2, plus x2 headroom; keep under v7x's 64 MiB.
    vmem_limit = int(min(64 << 20, max(16 << 20, 4 * per_step_bytes)))

    out = pl.pallas_call(
        _linear_kernel,
        out_shape=jax.ShapeDtypeStruct((N_pad, D_pad), dtype),
        grid=grid,
        in_specs=[
            pl.BlockSpec((tile_n, D), lambda i, j: (i, 0)),   # E rows, unpadded lanes
            pl.BlockSpec((D, tile_j), lambda i, j: (0, j)),   # W^T column tile
            pl.BlockSpec((1, tile_j), lambda i, j: (0, j)),   # bias column tile
        ],
        out_specs=pl.BlockSpec((tile_n, tile_j), lambda i, j: (i, j)),
        compiler_params=pltpu.CompilerParams(
            dimension_semantics=("parallel", "parallel"),
            vmem_limit_bytes=vmem_limit,
        ),
        cost_estimate=pl.CostEstimate(
            flops=2 * N * D * D,
            transcendentals=0,
            bytes_accessed=(N * D * in_bytes + D * D_pad * in_bytes
                            + D_pad * 4 + N * D_pad * out_bytes),
        ),
    )(e, w_t, b2d)

    return out[:N, :D]


def xavier_uniform(key, shape, dtype=jnp.float32):
    fan_in, fan_out = shape[1], shape[0]
    limit = float(np.sqrt(6.0 / (fan_in + fan_out)))
    return jax.random.uniform(key, shape, dtype=dtype, minval=-limit, maxval=limit)


if __name__ == "__main__":
    key = jax.random.PRNGKey(0)
    k_emb, k_w = jax.random.split(key)

    num_nodes = 64        # number of graph nodes (rows of embedding table)
    embedding_dim = 32    # embedding dimension

    # Deterministic stand-in for the deepwalk/Word2Vec embedding table.
    embedding = jax.random.normal(k_emb, (num_nodes, embedding_dim), dtype=jnp.float32)
    # nn.Linear(embedding_dim, embedding_dim): xavier_uniform weight, zero bias.
    weight = xavier_uniform(k_w, (embedding_dim, embedding_dim))
    bias = jnp.zeros((embedding_dim,), dtype=jnp.float32)

    ref = embedding @ weight.T + bias[None, :]

    # Exercise the Pallas kernel path.
    out = deepwalk_forward(embedding, weight, bias, force_pallas=True)
    out = jax.block_until_ready(out)
    np.testing.assert_allclose(np.asarray(out), np.asarray(ref), rtol=1e-5, atol=1e-5)

    # The small-problem fast path (pure XLA) also matches.
    fast = jax.block_until_ready(deepwalk_forward(embedding, weight, bias))
    np.testing.assert_allclose(np.asarray(fast), np.asarray(ref), rtol=1e-5, atol=1e-5)

    print("KERNEL_OK")
</pallas_src>

<mosaic_0001>
module attributes {stable_mosaic.version = 11 : i64} {
  func.func @_linear_kernel(%arg0: i32, %arg1: i32, %arg2: memref<32x32xf32, #tpu.memory_space<vmem>>, %arg3: memref<32x128xf32, #tpu.memory_space<vmem>>, %arg4: memref<1x128xf32, #tpu.memory_space<vmem>>, %arg5: memref<32x128xf32, #tpu.memory_space<vmem>>) attributes {dimension_semantics = [#tpu.dimension_semantics<parallel>, #tpu.dimension_semantics<parallel>], iteration_bounds = array<i64: 2, 1>, scalar_prefetch = 0 : i64, scratch_operands = 0 : i64, tpu.core_type = #tpu.core_type<tc>, window_params = [{transform_indices = @transform_0, window_bounds = array<i64: 32, 32>}, {transform_indices = @transform_1, window_bounds = array<i64: 32, 128>}, {transform_indices = @transform_2, window_bounds = array<i64: 1, 128>}, {transform_indices = @transform_3, window_bounds = array<i64: 32, 128>}]} {
    %c0 = arith.constant 0 : index
    %c0_0 = arith.constant 0 : index
    %0 = vector.load %arg2[%c0, %c0_0] : memref<32x32xf32, #tpu.memory_space<vmem>>, vector<32x32xf32>
    %c0_1 = arith.constant 0 : index
    %c0_2 = arith.constant 0 : index
    %1 = vector.load %arg3[%c0_1, %c0_2] : memref<32x128xf32, #tpu.memory_space<vmem>>, vector<32x128xf32>
    %cst = arith.constant dense<0.000000e+00> : vector<32x128xf32>
    %2 = tpu.matmul %0, %1, %cst {dimension_numbers = #tpu.dot_dimension_numbers<[1], [0], [0], [1], [0, 0, 1, 1], [], []>} : vector<32x32xf32>, vector<32x128xf32>, vector<32x128xf32> -> vector<32x128xf32>
    %c0_3 = arith.constant 0 : index
    %c0_4 = arith.constant 0 : index
    %3 = vector.load %arg4[%c0_3, %c0_4] : memref<1x128xf32, #tpu.memory_space<vmem>>, vector<1x128xf32>
    %4 = vector.broadcast %3 : vector<1x128xf32> to vector<32x128xf32>
    %5 = arith.addf %2, %4 : vector<32x128xf32>
    %c0_5 = arith.constant 0 : index
    %c0_6 = arith.constant 0 : index
    %6 = vector.load %arg5[%c0_5, %c0_6] : memref<32x128xf32, #tpu.memory_space<vmem>>, vector<32x128xf32>
    tpu.vector_store %arg5[%c0_5, %c0_6], %5 {strides = array<i32>} : memref<32x128xf32, #tpu.memory_space<vmem>>, vector<32x128xf32>,
    return
  }
  func.func @transform_0(%arg0: i32, %arg1: i32) -> (i32, i32) {
    %c0_i32 = arith.constant 0 : i32
    %c0_i32_0 = arith.constant 0 : i32
    return %arg0, %c0_i32 : i32, i32
  }
  func.func @transform_1(%arg0: i32, %arg1: i32) -> (i32, i32) {
    %c0_i32 = arith.constant 0 : i32
    %c0_i32_0 = arith.constant 0 : i32
    return %c0_i32, %arg1 : i32, i32
  }
  func.func @transform_2(%arg0: i32, %arg1: i32) -> (i32, i32) {
    %c0_i32 = arith.constant 0 : i32
    %c0_i32_0 = arith.constant 0 : i32
    return %c0_i32, %arg1 : i32, i32
  }
  func.func @transform_3(%arg0: i32, %arg1: i32) -> (i32, i32) {
    %c0_i32 = arith.constant 0 : i32
    return %arg0, %arg1 : i32, i32
  }
}

</mosaic_0001>

<llo_original>
// kernel: tpu_custom_call.1
$region0: #{tpu_custom_call.1}
  #allocation0 [shape = 'u32[]', space=smem, size = 0x4, offset = 0x4, fixed_abs, tag = 'smem constant byte address 0x4 - core index']
  #allocation1 [shape = 'u32[144,128]{1,0:T(1,128)}', space=vmem, size = 0x12000, scoped, tag = 'internal scratch']
  %s0 = inlined_call_operand.vmem [shape: f32[64,32], index: 0, kind: input, shape index: {}]
  %s1 = inlined_call_operand.vmem [shape: f32[32,128], index: 1, kind: input, shape index: {}]
  %s2 = inlined_call_operand.vmem [shape: f32[1,128], index: 2, kind: input, shape index: {}]
  %s3 = inlined_call_operand.hbm [shape: f32[64,128], index: 3, kind: output, shape index: {}]
  %s4 = sld [smem:[#allocation0]]
  $region45: #{tpu_custom_call.1} parent=0
    _
  %s6 = ssub.s32 1, %s4
  %s7 = scalar_select 0, %s6, %s4
  $region1: #{tpu_custom_call.1} parent=0
    #allocation2 [shape = 'u8[32768]{0}', space=vmem, size = 0x8000, scoped, tag = 'output window, operand 0']
    #allocation3 [shape = 's32[2]{0}', space=sflag, size = 0x8, scoped, tag = 'scoped memory for tpu_custom_call.1']
    %8 = vsyncpa [#allocation3], 0
    %s9 = scalar_lea.sflag [#allocation3], 1
    %10 = vsyncpa %s9, 0
    loop: start=0, step=1, limit=4
    $region2: #{tpu_custom_call.1} parent=1 // loop_pre_header
      _
    $region3: #{tpu_custom_call.1} parent=1 // loop_header
      %s12 = sphi 0, %s16
      %p13 = scmp.ge.s32.totalorder %s12, 4
      %s19 = sphi 0, %s31
      %s20 = sphi 0, %s27
      %s21 = sphi 0, %s19
      %s22 = sphi 0, %s20
      %s23 = sphi 0, %s21
      %s24 = sphi 0, %s22
      %s34 = sphi 0, %s36
      %s37 = sphi 0, %s34
      %s38 = sphi 0, %s37
      %s54 = sphi 0, %s38
      %s60 = sphi 0, %s62
      %s63 = sphi 0, %s60
      %s64 = sphi 0, %s63
      %s80 = sphi 0, %s64
      %s86 = sphi 0, %s88
      %s89 = sphi 0, %s86
      %s90 = sphi 0, %s89
      %s106 = sphi 0, %s90
      %s114 = sphi 0, %s116
      %s117 = sphi 0, %s114
      %s118 = sphi 0, %s117
      %s134 = sphi 0, %s118
    $region4: #{tpu_custom_call.1} parent=1 // loop_header_branch
      %15 = sbr.rel (%p13) target = $region8
    $region5: #{tpu_custom_call.1} parent=1 // loop_body
      %s17 = ssub.s32 %s12, 1
      %s18 = ssub.s32 %s12, 2
      %s25 = sadd.s32 1, %s20
      %p26 = scmp.ge.s32.totalorder %s25, 1
      %s27 = scalar_select %p26, 0, %s25
      %s28 = sadd.s32 1, %s19
      %s29 = scalar_select %p26, %s28, %s19
      %p30 = scmp.ge.s32.totalorder %s29, 2
      %s31 = scalar_select %p30, 0, %s29
      %s32 = ssub.s32 %s19, %s31
      %p33 = scmp.eq.s32.totalorder %s32, 0
      %s35 = sadd.s32 %s34, 1
      %s36 = scalar_select %p33, %s34, %s35
      %p39 = pneg %p33
      %p40 = scmp.eq.s32.totalorder %s12, 1
      %p41 = por %p39, %p40
      %p42 = scmp.ne.s32.totalorder %s34, %s37
      %p43 = scmp.eq.s32.totalorder %s12, 0
      %p44 = por %p42, %p43
      %p45 = scmp.ne.s32.totalorder %s34, %s37
      %p46 = scmp.eq.s32.totalorder %s17, 1
      %p47 = por %p45, %p46
      %p48 = scmp.ne.s32.totalorder %s37, %s38
      %p49 = scmp.eq.s32.totalorder %s17, 0
      %p50 = por %p48, %p49
      %p51 = scmp.ne.s32.totalorder %s37, %s38
      %p52 = scmp.eq.s32.totalorder %s18, 1
      %p53 = por %p51, %p52
      %p55 = scmp.ne.s32.totalorder %s38, %s54
      %p56 = scmp.eq.s32.totalorder %s18, 0
      %p57 = por %p55, %p56
      %s58 = ssub.s32 %s20, %s27
      %p59 = scmp.eq.s32.totalorder %s58, 0
      %s61 = sadd.s32 %s60, 1
      %s62 = scalar_select %p59, %s60, %s61
      %p65 = pneg %p59
      %p66 = scmp.eq.s32.totalorder %s12, 1
      %p67 = por %p65, %p66
      %p68 = scmp.ne.s32.totalorder %s60, %s63
      %p69 = scmp.eq.s32.totalorder %s12, 0
      %p70 = por %p68, %p69
      %p71 = scmp.ne.s32.totalorder %s60, %s63
      %p72 = scmp.eq.s32.totalorder %s17, 1
      %p73 = por %p71, %p72
      %p74 = scmp.ne.s32.totalorder %s63, %s64
      %p75 = scmp.eq.s32.totalorder %s17, 0
      %p76 = por %p74, %p75
      %p77 = scmp.ne.s32.totalorder %s63, %s64
      %p78 = scmp.eq.s32.totalorder %s18, 1
      %p79 = por %p77, %p78
      %p81 = scmp.ne.s32.totalorder %s64, %s80
      %p82 = scmp.eq.s32.totalorder %s18, 0
      %p83 = por %p81, %p82
      %s84 = ssub.s32 %s20, %s27
      %p85 = scmp.eq.s32.totalorder %s84, 0
      %s87 = sadd.s32 %s86, 1
      %s88 = scalar_select %p85, %s86, %s87
      %p91 = pneg %p85
      %p92 = scmp.eq.s32.totalorder %s12, 1
      %p93 = por %p91, %p92
      %p94 = scmp.ne.s32.totalorder %s86, %s89
      %p95 = scmp.eq.s32.totalorder %s12, 0
      %p96 = por %p94, %p95
      %p97 = scmp.ne.s32.totalorder %s86, %s89
      %p98 = scmp.eq.s32.totalorder %s17, 1
      %p99 = por %p97, %p98
      %p100 = scmp.ne.s32.totalorder %s89, %s90
      %p101 = scmp.eq.s32.totalorder %s17, 0
      %p102 = por %p100, %p101
      %p103 = scmp.ne.s32.totalorder %s89, %s90
      %p104 = scmp.eq.s32.totalorder %s18, 1
      %p105 = por %p103, %p104
      %p107 = scmp.ne.s32.totalorder %s90, %s106
      %p108 = scmp.eq.s32.totalorder %s18, 0
      %p109 = por %p107, %p108
      %s110 = ssub.s32 %s19, %s31
      %s111 = ssub.s32 %s20, %s27
      %s112 = sor.u32 %s110, %s111
      %p113 = scmp.eq.s32.totalorder %s112, 0
      %s115 = sadd.s32 %s114, 1
      %s116 = scalar_select %p113, %s114, %s115
      %p119 = pneg %p113
      %p120 = scmp.eq.s32.totalorder %s12, 1
      %p121 = por %p119, %p120
      %p122 = scmp.ne.s32.totalorder %s114, %s117
      %p123 = scmp.eq.s32.totalorder %s12, 0
      %p124 = por %p122, %p123
      %p125 = scmp.ne.s32.totalorder %s114, %s117
      %p126 = scmp.eq.s32.totalorder %s17, 1
      %p127 = por %p125, %p126
      %p128 = scmp.ne.s32.totalorder %s117, %s118
      %p129 = scmp.eq.s32.totalorder %s17, 0
      %p130 = por %p128, %p129
      %p131 = scmp.ne.s32.totalorder %s117, %s118
      %p132 = scmp.eq.s32.totalorder %s18, 1
      %p133 = por %p131, %p132
      %p135 = scmp.ne.s32.totalorder %s118, %s134
      %p136 = scmp.eq.s32.totalorder %s18, 0
      %p137 = por %p135, %p136
      %p138 = scmp.le.s32.totalorder 1, %s12
      %p139 = scmp.lt.s32.totalorder %s12, 3
      %p140 = pnand %p138, %p139
      %p141 = pneg %p140
      // Predicated region
      $region9: #{tpu_custom_call.1} parent=5 // pred_check
        _
      $region10: #{tpu_custom_call.1} parent=5 // pred_check_branch
        %143 = sbr.rel (%p140) target = $region12
      $region11: #{tpu_custom_call.1} parent=5 // pred_region
        %s144 = ssub.s32 %s12, 1
        // Predicated region
        $region13: #{tpu_custom_call.1} parent=11 // pred_check
          %p145 = pneg %p76
        $region14: #{tpu_custom_call.1} parent=11 // pred_check_branch
          %147 = sbr.rel (%p145) target = $region16
        $region15: #{tpu_custom_call.1} parent=11 // pred_region
          %p148 = scmp.lt.s32.totalorder %s22, 0
          %s149 = scalar_select %p148, %s22, 0
          %s150 = smul.addr %s149, 8
          %s151 = scalar_lea.vmem %s1, %s150
        $region16: #{tpu_custom_call.1} parent=11 // pred_fallthru
          _
        // Predicated region
        $region17: #{tpu_custom_call.1} parent=11 // pred_check
          %p152 = pneg %p102
        $region18: #{tpu_custom_call.1} parent=11 // pred_check_branch
          %154 = sbr.rel (%p152) target = $region20
        $region19: #{tpu_custom_call.1} parent=11 // pred_region
          %p155 = scmp.lt.s32.totalorder %s22, 0
          %s156 = scalar_select %p155, %s22, 0
          %s157 = scalar_lea.vmem %s2, %s156
        $region20: #{tpu_custom_call.1} parent=11 // pred_fallthru
          _
      $region12: #{tpu_custom_call.1} parent=5 // pred_fallthru
        _
      %p158 = scmp.lt.s32.totalorder %s12, 2
      // Predicated region
      $region21: #{tpu_custom_call.1} parent=5 // pred_check
        %p159 = pneg %p158
      $region22: #{tpu_custom_call.1} parent=5 // pred_check_branch
        %161 = sbr.rel (%p159) target = $region24
      $region23: #{tpu_custom_call.1} parent=5 // pred_region
        // Predicated region
        $region25: #{tpu_custom_call.1} parent=23 // pred_check
          %p162 = pneg %p44
        $region26: #{tpu_custom_call.1} parent=23 // pred_check_branch
          %164 = sbr.rel (%p162) target = $region28
        $region27: #{tpu_custom_call.1} parent=23 // pred_region
          %s165 = smul.u32 4, %s19
          %p166 = scmp.lt.s32.totalorder %s165, 7
          %s167 = scalar_select %p166, %s165, 7
          %s168 = smul.addr %s167, 8
          %s169 = scalar_lea.vmem %s0, %s168
          %s170 = smul.u32 4, %s19
        $region28: #{tpu_custom_call.1} parent=23 // pred_fallthru
          _
      $region24: #{tpu_custom_call.1} parent=5 // pred_fallthru
        _
      %p171 = scmp.le.s32.totalorder 1, %s12
      %p172 = scmp.lt.s32.totalorder %s12, 3
      %p173 = pnand %p171, %p172
      %p174 = pneg %p173
      // Predicated region
      $region29: #{tpu_custom_call.1} parent=5 // pred_check
        _
      $region30: #{tpu_custom_call.1} parent=5 // pred_check_branch
        %176 = sbr.rel (%p173) target = $region32
      $region31: #{tpu_custom_call.1} parent=5 // pred_region
        %s177 = ssub.s32 %s12, 1
        %s178 = smul.u32 4, %s21
        %p179 = scmp.lt.s32.totalorder %s178, 7
        %s180 = scalar_select %p179, %s178, 7
        %s181 = smul.addr %s180, 8
        %s182 = scalar_lea.vmem %s0, %s181
        %p183 = pneg %p50
        %p184 = pneg %p47
        %p185 = scmp.lt.s32.totalorder %s22, 0
        %s186 = scalar_select %p185, %s22, 0
        %s187 = smul.addr %s186, 8
        %s188 = scalar_lea.vmem %s1, %s187
        %p189 = pneg %p76
        %p190 = pneg %p73
        %p191 = scmp.lt.s32.totalorder %s22, 0
        %s192 = scalar_select %p191, %s22, 0
        %s193 = scalar_lea.vmem %s2, %s192
        %p194 = pneg %p102
        %p195 = pneg %p99
        %p196 = pneg %p130
        %p197 = pneg %p127
        %s198 = sand.u32 %s117, 1
        %s199 = scalar_lea.sflag [#allocation3], %s198
        %s200 = sand.u32 %s117, 1
        %s201 = smul.addr %s200, 32
        %s202 = scalar_lea.vmem [#allocation2], %s201
        %s203 = smul.u32 4, %s21
        %p204 = scmp.lt.s32.totalorder %s203, 7
        %s205 = scalar_select %p204, %s203, 7
        %s206 = smul.addr %s205, 8
        %s207 = scalar_lea.vmem %s0, %s206
        %s208 = smul.u32 4, %s21
        %p209 = scmp.lt.s32.totalorder %s22, 0
        %s210 = scalar_select %p209, %s22, 0
        %s211 = smul.addr %s210, 8
        %s212 = scalar_lea.vmem %s1, %s211
        %p213 = scmp.lt.s32.totalorder %s22, 0
        %s214 = scalar_select %p213, %s22, 0
        %s215 = scalar_lea.vmem %s2, %s214
        %s216 = smul.u32 4, %s21
        %v217 = vld [vmem:[%s207] sm:$0xff]
        %v218 = vld [vmem:[%s207 + $0x8] sm:$0xff]
        %v219 = vld [vmem:[%s207 + $0x10] sm:$0xff]
        %v220 = vld [vmem:[%s207 + $0x18] sm:$0xff]
        %v221 = vld [vmem:[%s212] sm:$0xff]
        %v222 = vld [vmem:[%s212 + $0x8] sm:$0xff]
        %v223 = vld [vmem:[%s212 + $0x10] sm:$0xff]
        %v224 = vld [vmem:[%s212 + $0x18] sm:$0xff]
        %v225 = vld [vmem:[%s215] sm:$0x1]
        %v227 = vlaneseq
        %v228 = vshrl.u32 %v227, 7
        %v229 = vsub.s32 0, %v228
        %v230 = vrot.slane %v225, %v229
        %vm232 = vcmask 261120
        %v234 = vsel %vm232, %v217, 0
        %v237 = vsel %vm232, %v218, 0
        %v240 = vsel %vm232, %v219, 0
        %v243 = vsel %vm232, %v220, 0
        %245 = vmatprep.subr.mxu0 0.0
        %246 = vmatpush1.msra.mxu0 %v221
        %247 = vmatprep.subr.mxu0 0.0
        %248 = vmatpush1.msra.mxu0 %v222
        %249 = vmatprep.subr.mxu0 0.0
        %250 = vmatpush1.msra.mxu0 %v223
        %251 = vmatprep.subr.mxu0 0.0
        %252 = vmatpush1.msra.mxu0 %v224
        %253 = vmatprep.subr.mxu0 0.0
        %254 = vmatpush1.msra.mxu0 0.0
        %255 = vmatprep.subr.mxu0 0.0
        %256 = vmatpush1.msra.mxu0 0.0
        %257 = vmatprep.subr.mxu0 0.0
        %258 = vmatpush1.msra.mxu0 0.0
        %259 = vmatprep.subr.mxu0 0.0
        %260 = vmatpush1.msra.mxu0 0.0
        %261 = vmatprep.subr.mxu0 0.0
        %262 = vmatpush1.msra.mxu0 0.0
        %263 = vmatprep.subr.mxu0 0.0
        %264 = vmatpush1.msra.mxu0 0.0
        %265 = vmatprep.subr.mxu0 0.0
        %266 = vmatpush1.msra.mxu0 0.0
        %267 = vmatprep.subr.mxu0 0.0
        %268 = vmatpush1.msra.mxu0 0.0
        %269 = vmatprep.subr.mxu0 0.0
        %270 = vmatpush1.msra.mxu0 0.0
        %271 = vmatprep.subr.mxu0 0.0
        %272 = vmatpush1.msra.mxu0 0.0
        %273 = vmatprep.subr.mxu0 0.0
        %274 = vmatpush1.msra.mxu0 0.0
        %275 = vmatprep.subr.mxu0 0.0
        %276 = vmatpush1.msra.mxu0 0.0
        %277 = vmatprep.subr.mxu0 0.0
        %278 = vmatpush1.msra.mxu0 0.0
        %279 = vmatprep.subr.mxu0 0.0
        %280 = vmatpush1.msra.mxu0 0.0
        %281 = vmatprep.subr.mxu0 0.0
        %282 = vmatpush1.msra.mxu0 0.0
        %283 = vmatprep.subr.mxu0 0.0
        %284 = vmatpush1.msra.mxu0 0.0
        %285 = vmatprep.subr.mxu0 0.0
        %286 = vmatpush1.msra.mxu0 0.0
        %287 = vmatprep.subr.mxu0 0.0
        %288 = vmatpush1.msra.mxu0 0.0
        %289 = vmatprep.subr.mxu0 0.0
        %290 = vmatpush1.msra.mxu0 0.0
        %291 = vmatprep.subr.mxu0 0.0
        %292 = vmatpush1.msra.mxu0 0.0
        %293 = vmatprep.subr.mxu0 0.0
        %294 = vmatpush1.msra.mxu0 0.0
        %295 = vmatprep.subr.mxu0 0.0
        %296 = vmatpush1.msra.mxu0 0.0
        %297 = vmatprep.subr.mxu0 0.0
        %298 = vmatpush1.msra.mxu0 0.0
        %299 = vmatprep.subr.mxu0 0.0
        %300 = vmatpush1.msra.mxu0 0.0
        %301 = vmatprep.subr.mxu0 0.0
        %302 = vmatpush1.msra.mxu0 0.0
        %303 = vmatprep.subr.mxu0 0.0
        %304 = vmatpush1.msra.mxu0 0.0
        %305 = vmatprep.subr.mxu0 0.0
        %306 = vmatpush1.msra.mxu0 0.0
        %307 = vmatprep.subr.mxu0 0.0
        %308 = vmatpush1.msra.mxu0 0.0
        %309 = vmatprep.mubr.f32.mxu0 0.0
        %310 = vmatmul.mubr.f32.gmra.mrb[0].mxu0 %v234
        %v311 = vpop.f32.mrb[0].mxu0
        %v312 = vadd.f32 %v230, %v311
        %v313 = vpop.f32.mrb[0].mxu0
        %314 = vmatprep.mubr.f32.mxu0 0.0
        %315 = vmatmul.mubr.f32.gmra.mrb[0].mxu0 %v237
        %v316 = vpop.f32.mrb[0].mxu0
        %v317 = vadd.f32 %v230, %v316
        %v318 = vpop.f32.mrb[0].mxu0
        %319 = vmatprep.mubr.f32.mxu0 0.0
        %320 = vmatmul.mubr.f32.gmra.mrb[0].mxu0 %v240
        %v321 = vpop.f32.mrb[0].mxu0
        %v322 = vadd.f32 %v230, %v321
        %v323 = vpop.f32.mrb[0].mxu0
        %324 = vmatprep.mubr.f32.mxu0 0.0
        %325 = vmatmul.mubr.f32.gmra.mrb[0].mxu0 %v243
        %v326 = vpop.f32.mrb[0].mxu0
        %v327 = vadd.f32 %v230, %v326
        %v328 = vpop.f32.mrb[0].mxu0
        %329 = vdwg.mxu0
        %330 = vst [vmem:[%s202] sm:$0xff] %v312
        %331 = vst [vmem:[%s202 + $0x8] sm:$0xff] %v317
        %332 = vst [vmem:[%s202 + $0x10] sm:$0xff] %v322
        %333 = vst [vmem:[%s202 + $0x18] sm:$0xff] %v327
        %s334 = sand.u32 %s117, 1
        %s335 = scalar_lea.sflag [#allocation3], %s334
        %s336 = sand.u32 %s117, 1
        %s337 = smul.addr %s336, 32
        %s338 = scalar_lea.vmem [#allocation2], %s337
        // Predicated region
        $region33: #{tpu_custom_call.1} parent=31 // pred_check
          %p339 = pneg %p127
        $region34: #{tpu_custom_call.1} parent=31 // pred_check_branch
          %341 = sbr.rel (%p339) target = $region36
        $region35: #{tpu_custom_call.1} parent=31 // pred_region
          %s342 = smul.u32 4, %s21
          %s344 = ssub.s32 512, 512
          %345 = vsyncadd %s335, %s344
          %s346 = sadd.s32 %s22, %s342
          %s347 = smul.addr %s346, 128
          %s348 = scalar_lea.hbm %s3, %s347
          %s349 = sshll.u32 %s338, 4
          %s350 = int_to_ptr.vmem [resolvable:$true] %s349
          %355 = dma.vmem_to_hbm [thread:$0]  %s350, 512, %s348, %s335, 128, 128, 8
        $region36: #{tpu_custom_call.1} parent=31 // pred_fallthru
          _
      $region32: #{tpu_custom_call.1} parent=5 // pred_fallthru
        _
      %p356 = scmp.le.s32.totalorder 2, %s12
      // Predicated region
      $region37: #{tpu_custom_call.1} parent=5 // pred_check
        %p357 = pneg %p356
      $region38: #{tpu_custom_call.1} parent=5 // pred_check_branch
        %359 = sbr.rel (%p357) target = $region40
      $region39: #{tpu_custom_call.1} parent=5 // pred_region
        %s360 = ssub.s32 %s12, 2
        // Predicated region
        $region41: #{tpu_custom_call.1} parent=39 // pred_check
          %p361 = pneg %p133
        $region42: #{tpu_custom_call.1} parent=39 // pred_check_branch
          %363 = sbr.rel (%p361) target = $region44
        $region43: #{tpu_custom_call.1} parent=39 // pred_region
          %s364 = sand.u32 %s118, 1
          %s365 = scalar_lea.sflag [#allocation3], %s364
          %s366 = sand.u32 %s118, 1
          %s367 = smul.addr %s366, 32
          %s368 = scalar_lea.vmem [#allocation2], %s367
          %369 = dma.done %s365, 512
        $region44: #{tpu_custom_call.1} parent=39 // pred_fallthru
          _
      $region40: #{tpu_custom_call.1} parent=5 // pred_fallthru
        _
    $region6: #{tpu_custom_call.1} parent=1 // loop_footer
      %s16 = sadd.s32 1, %s12
    $region7: #{tpu_custom_call.1} parent=1 // loop_footer_branch
      %11 = sbr.rel target = $region3
    $region8: #{tpu_custom_call.1} parent=1 // loop_exit
      _
    %370 = vsyncpa [#allocation3], 1
    %s371 = scalar_lea.sflag [#allocation3], 1
    %372 = vsyncpa %s371, 1

</llo_original>
